<compile_context>
chip_gen: v7x
topology: tpu7x:2x2x1
jax: 0.10.0
libtpu: 0.0.40
codegen_flags: <defaults>
</compile_context>

<pallas_src>
import functools

import jax
import jax.numpy as jnp
from jax.experimental import pallas as pl
from jax.experimental.pallas import tpu as pltpu

_LANE = 128
_SUBLANE = 8


def _round_up(x, m):
    return ((x + m - 1) // m) * m


# --------------------------------------------------------------------------- #
# Stage 1 kernel: feature transform  XW = H @ W   (computed once per layer)    #
# --------------------------------------------------------------------------- #
def _feature_transform_kernel(h_ref, w_ref, o_ref):
    o_ref[...] = jnp.dot(h_ref[...], w_ref[...],
                         preferred_element_type=jnp.float32).astype(o_ref.dtype)


def _feature_transform(h_pad, w_pad, *, tile_m):
    n_pad, fin_pad = h_pad.shape
    fout_pad = w_pad.shape[1]
    num_tiles = n_pad // tile_m

    vmem_bytes = (2 * tile_m * fin_pad * 2      # H row tile (bf16, double buf)
                  + 2 * fin_pad * fout_pad * 2  # resident W (conservative 2x)
                  + 2 * tile_m * fout_pad * 2   # output tile (bf16, double buf)
                  + (2 << 20))
    vmem_bytes = int(min(max(vmem_bytes, 8 << 20), 56 << 20))

    return pl.pallas_call(
        _feature_transform_kernel,
        out_shape=jax.ShapeDtypeStruct((n_pad, fout_pad), jnp.bfloat16),
        grid=(num_tiles,),
        in_specs=[
            pl.BlockSpec((tile_m, fin_pad), lambda i: (i, 0)),     # H row block
            pl.BlockSpec((fin_pad, fout_pad), lambda i: (0, 0)),   # W (resident)
        ],
        out_specs=pl.BlockSpec((tile_m, fout_pad), lambda i: (i, 0)),
        compiler_params=pltpu.CompilerParams(
            dimension_semantics=("parallel",),
            vmem_limit_bytes=vmem_bytes),
        cost_estimate=pl.CostEstimate(
            flops=int(2 * n_pad * fin_pad * fout_pad),
            transcendentals=0,
            bytes_accessed=int(h_pad.size * 2 + num_tiles * w_pad.size * 2
                               + n_pad * fout_pad * 2)),
    )(h_pad, w_pad)


# --------------------------------------------------------------------------- #
# Stage 2 kernel: aggregation  o = act(A_tile @ XW + b)                        #
# --------------------------------------------------------------------------- #
def _aggregate_kernel(a_ref, xw_ref, b_ref, o_ref, *, activation,
                      num_valid_cols):
    y = jnp.dot(a_ref[...], xw_ref[...], preferred_element_type=jnp.float32)
    y = y + b_ref[...]

    if activation == "relu":
        o_ref[...] = jnp.maximum(y, 0.0).astype(o_ref.dtype)
    elif activation == "log_softmax":
        # Mask the zero-padded class columns so they do not perturb softmax.
        col = jax.lax.broadcasted_iota(jnp.int32, y.shape, 1)
        y = jnp.where(col < num_valid_cols, y, -jnp.inf)
        m = jnp.max(y, axis=1, keepdims=True)
        s = y - m
        lse = jnp.log(jnp.sum(jnp.exp(s), axis=1, keepdims=True))
        o_ref[...] = (s - lse).astype(o_ref.dtype)
    else:
        o_ref[...] = y.astype(o_ref.dtype)


def _aggregate(a_pad, xw_pad, b_pad, *, tile_m, activation, num_valid_cols,
               out_dtype):
    n_pad = a_pad.shape[0]
    fout_pad = xw_pad.shape[1]
    num_tiles = n_pad // tile_m
    out_itemsize = jnp.dtype(out_dtype).itemsize

    vmem_bytes = (2 * tile_m * n_pad * 2             # A row tile (bf16, dbl buf)
                  + 2 * n_pad * fout_pad * 2         # resident XW (conservative)
                  + 2 * tile_m * fout_pad * out_itemsize  # output tile
                  + 2 * fout_pad * 4                 # bias
                  + (4 << 20))                       # headroom
    vmem_bytes = int(min(max(vmem_bytes, 16 << 20), 56 << 20))

    flops = 2 * n_pad * n_pad * fout_pad
    bytes_accessed = (a_pad.size * 2 + xw_pad.size * 2 + b_pad.size * 4
                      + n_pad * fout_pad * out_itemsize)
    transcendentals = n_pad * fout_pad if activation == "log_softmax" else 0

    kernel = functools.partial(_aggregate_kernel, activation=activation,
                               num_valid_cols=num_valid_cols)

    return pl.pallas_call(
        kernel,
        out_shape=jax.ShapeDtypeStruct((n_pad, fout_pad), out_dtype),
        grid=(num_tiles,),
        in_specs=[
            pl.BlockSpec((tile_m, n_pad), lambda i: (i, 0)),      # A row block (streamed)
            pl.BlockSpec((n_pad, fout_pad), lambda i: (0, 0)),    # XW (resident)
            pl.BlockSpec((1, fout_pad), lambda i: (0, 0)),        # bias (resident)
        ],
        out_specs=pl.BlockSpec((tile_m, fout_pad), lambda i: (i, 0)),
        compiler_params=pltpu.CompilerParams(
            dimension_semantics=("parallel",),
            vmem_limit_bytes=vmem_bytes),
        cost_estimate=pl.CostEstimate(flops=int(flops),
                                      transcendentals=int(transcendentals),
                                      bytes_accessed=int(bytes_accessed)),
    )(a_pad, xw_pad, b_pad)


def _gcn_layer(a_pad, h_pad, w_pad, b_pad, *, tile_m, activation,
               num_valid_cols, out_dtype):
    xw = _feature_transform(h_pad, w_pad, tile_m=tile_m)
    return _aggregate(a_pad, xw, b_pad, tile_m=tile_m, activation=activation,
                      num_valid_cols=num_valid_cols, out_dtype=out_dtype)


# --------------------------------------------------------------------------- #
# Plain-JAX glue: adjacency normalization, parameter init, padding            #
# --------------------------------------------------------------------------- #
def build_normalized_adjacency(edge_index, num_nodes):
    """Dense D^{-1/2} (A + I) D^{-1/2}, matching PyG GCNConv normalization
    (in-degree for both factors, flow='source_to_target')."""
    loops = jnp.arange(num_nodes, dtype=edge_index.dtype)
    src = jnp.concatenate([edge_index[0], loops])
    dst = jnp.concatenate([edge_index[1], loops])
    adj = jnp.zeros((num_nodes, num_nodes), jnp.float32).at[dst, src].add(1.0)
    deg = jnp.sum(adj, axis=1)                      # deg >= 1 (self loops)
    dinv = jax.lax.rsqrt(deg)
    return dinv[:, None] * adj * dinv[None, :]


def init_params(key, num_features, hidden_channels, num_classes):
    """Deterministic glorot-uniform weights, zero bias (GCNConv default)."""
    def glorot(k, fan_in, fan_out):
        limit = jnp.sqrt(6.0 / (fan_in + fan_out))
        return jax.random.uniform(k, (fan_in, fan_out), jnp.float32, -limit, limit)

    k1, k2, k3 = jax.random.split(key, 3)
    return {
        "w1": glorot(k1, num_features, hidden_channels),
        "b1": jnp.zeros((1, hidden_channels), jnp.float32),
        "w2": glorot(k2, hidden_channels, hidden_channels),
        "b2": jnp.zeros((1, hidden_channels), jnp.float32),
        "w3": glorot(k3, num_features if False else hidden_channels, num_classes),
        "b3": jnp.zeros((1, num_classes), jnp.float32),
    }


def _choose_tiling(num_nodes):
    """Row-tile size + padded node count. Targets ~8 MiB bf16 A row tiles
    (~16 MiB double-buffered), which fits comfortably on v5e/v6e (128 MiB VMEM)
    and v7x (64 MiB VMEM)."""
    n8 = _round_up(max(num_nodes, _SUBLANE), _SUBLANE)
    tile_m = (8 << 20) // (n8 * 2)
    tile_m = max(_SUBLANE, min(512, (tile_m // _SUBLANE) * _SUBLANE))
    tile_m = min(tile_m, n8)
    n_pad = _round_up(n8, tile_m)
    return tile_m, n_pad


def traffic_gnn_forward(x, edge_index, params):
    n, f = x.shape
    hidden = params["w1"].shape[1]
    num_classes = params["w3"].shape[1]

    tile_m, n_pad = _choose_tiling(n)
    f_pad = _round_up(f, _LANE)
    hid_pad = _round_up(hidden, _LANE)
    cls_pad = _round_up(num_classes, _LANE)

    # O(N^2) adjacency: bf16, zero-padded to (N_pad, N_pad); streamed by the kernel.
    a_hat = build_normalized_adjacency(edge_index, n)
    a_hat = jnp.pad(a_hat, ((0, n_pad - n), (0, n_pad - n))).astype(jnp.bfloat16)

    # Lane-dense (128-multiple) zero-padding of activations / weights / biases.
    h0 = jnp.pad(x, ((0, n_pad - n), (0, f_pad - f))).astype(jnp.bfloat16)
    w1 = jnp.pad(params["w1"], ((0, f_pad - f), (0, hid_pad - hidden))).astype(jnp.bfloat16)
    b1 = jnp.pad(params["b1"], ((0, 0), (0, hid_pad - hidden))).astype(jnp.float32)
    w2 = jnp.pad(params["w2"], ((0, hid_pad - hidden), (0, hid_pad - hidden))).astype(jnp.bfloat16)
    b2 = jnp.pad(params["b2"], ((0, 0), (0, hid_pad - hidden))).astype(jnp.float32)
    w3 = jnp.pad(params["w3"], ((0, hid_pad - hidden), (0, cls_pad - num_classes))).astype(jnp.bfloat16)
    b3 = jnp.pad(params["b3"], ((0, 0), (0, cls_pad - num_classes))).astype(jnp.float32)

    # conv1 -> relu
    h1 = _gcn_layer(a_hat, h0, w1, b1, tile_m=tile_m, activation="relu",
                    num_valid_cols=hidden, out_dtype=jnp.bfloat16)
    # TODO(synk): F.dropout(p=0.5) only acts when training=True; inference path is identity.
    # conv2 -> relu
    h2 = _gcn_layer(a_hat, h1, w2, b2, tile_m=tile_m, activation="relu",
                    num_valid_cols=hidden, out_dtype=jnp.bfloat16)
    # conv3 -> log_softmax (padded class columns masked to -inf inside the kernel)
    logits = _gcn_layer(a_hat, h2, w3, b3, tile_m=tile_m, activation="log_softmax",
                        num_valid_cols=num_classes, out_dtype=jnp.float32)
    return logits[:n, :num_classes]


def reference_forward(x, edge_index, params):
    """Pure-JAX f32 dense reference of the same forward pass."""
    a = build_normalized_adjacency(edge_index, x.shape[0])
    h = a @ (x @ params["w1"]) + params["b1"]
    h = jnp.maximum(h, 0.0)
    h = a @ (h @ params["w2"]) + params["b2"]
    h = jnp.maximum(h, 0.0)
    h = a @ (h @ params["w3"]) + params["b3"]
    return jax.nn.log_softmax(h, axis=1)


if __name__ == "__main__":
    num_nodes = 16
    num_features = 8
    hidden_channels = 32
    num_classes = 8
    num_edges = 40

    key = jax.random.PRNGKey(0)
    k_x, k_e, k_p = jax.random.split(key, 3)

    x = jax.random.normal(k_x, (num_nodes, num_features), jnp.float32)
    edge_index = jax.random.randint(k_e, (2, num_edges), 0, num_nodes,
                                    dtype=jnp.int32)
    params = init_params(k_p, num_features, hidden_channels, num_classes)

    out = traffic_gnn_forward(x, edge_index, params)
    out = jax.block_until_ready(out)

    assert out.shape == (num_nodes, num_classes)
    # log_softmax rows must sum (in prob space) to 1
    row_sums = jnp.sum(jnp.exp(out), axis=1)
    assert jnp.allclose(row_sums, 1.0, atol=1e-3), row_sums
    # match the f32 dense reference (loose tolerance: bf16 matmul inputs)
    ref = reference_forward(x, edge_index, params)
    assert jnp.max(jnp.abs(out - ref)) < 0.1, jnp.max(jnp.abs(out - ref))

    print("KERNEL_OK")
</pallas_src>

<mosaic_0001>
module attributes {stable_mosaic.version = 11 : i64} {
  func.func @_feature_transform_kernel(%arg0: i32, %arg1: memref<16x128xbf16, #tpu.memory_space<vmem>>, %arg2: memref<128x128xbf16, #tpu.memory_space<vmem>>, %arg3: memref<16x128xbf16, #tpu.memory_space<vmem>>) attributes {dimension_semantics = [#tpu.dimension_semantics<parallel>], iteration_bounds = array<i64: 1>, scalar_prefetch = 0 : i64, scratch_operands = 0 : i64, tpu.core_type = #tpu.core_type<tc>, window_params = [{transform_indices = @transform_0, window_bounds = array<i64: 16, 128>}, {pipeline_mode = #tpu.pipeline_mode<synchronous>, transform_indices = @transform_1, window_bounds = array<i64: 128, 128>}, {transform_indices = @transform_2, window_bounds = array<i64: 16, 128>}]} {
    %c0 = arith.constant 0 : index
    %c0_0 = arith.constant 0 : index
    %0 = vector.load %arg1[%c0, %c0_0] : memref<16x128xbf16, #tpu.memory_space<vmem>>, vector<16x128xbf16>
    %c0_1 = arith.constant 0 : index
    %c0_2 = arith.constant 0 : index
    %1 = vector.load %arg2[%c0_1, %c0_2] : memref<128x128xbf16, #tpu.memory_space<vmem>>, vector<128x128xbf16>
    %cst = arith.constant dense<0.000000e+00> : vector<16x128xf32>
    %2 = tpu.matmul %0, %1, %cst {dimension_numbers = #tpu.dot_dimension_numbers<[1], [0], [0], [1], [0, 0, 1, 1], [], []>} : vector<16x128xbf16>, vector<128x128xbf16>, vector<16x128xf32> -> vector<16x128xf32>
    %3 = arith.truncf %2 : vector<16x128xf32> to vector<16x128xbf16>
    %c0_3 = arith.constant 0 : index
    %c0_4 = arith.constant 0 : index
    %4 = vector.load %arg3[%c0_3, %c0_4] : memref<16x128xbf16, #tpu.memory_space<vmem>>, vector<16x128xbf16>
    tpu.vector_store %arg3[%c0_3, %c0_4], %3 {strides = array<i32>} : memref<16x128xbf16, #tpu.memory_space<vmem>>, vector<16x128xbf16>,
    return
  }
  func.func @transform_0(%arg0: i32) -> (i32, i32) {
    %c0_i32 = arith.constant 0 : i32
    %c0_i32_0 = arith.constant 0 : i32
    return %arg0, %c0_i32 : i32, i32
  }
  func.func @transform_1(%arg0: i32) -> (i32, i32) {
    %c0_i32 = arith.constant 0 : i32
    %c0_i32_0 = arith.constant 0 : i32
    %c0_i32_1 = arith.constant 0 : i32
    return %c0_i32, %c0_i32_0 : i32, i32
  }
  func.func @transform_2(%arg0: i32) -> (i32, i32) {
    %c0_i32 = arith.constant 0 : i32
    %c0_i32_0 = arith.constant 0 : i32
    return %arg0, %c0_i32 : i32, i32
  }
}

</mosaic_0001>

<llo_original>
// kernel: tpu_custom_call.1
$region0: #{tpu_custom_call.1}
  #allocation0 [shape = 'u32[]', space=smem, size = 0x4, offset = 0x4, fixed_abs, tag = 'smem constant byte address 0x4 - core index']
  #allocation1 [shape = 'u32[144,128]{1,0:T(1,128)}', space=vmem, size = 0x12000, scoped, tag = 'internal scratch']
  %s0 = inlined_call_operand.hbm [shape: bf16[16,128], index: 0, kind: input, shape index: {}]
  %s1 = inlined_call_operand.hbm [shape: bf16[128,128], index: 1, kind: input, shape index: {}]
  %s2 = inlined_call_operand.hbm [shape: bf16[16,128], index: 2, kind: output, shape index: {}]
  %s3 = sld [smem:[#allocation0]]
  $region26: #{tpu_custom_call.1} parent=0
    _
  %s5 = ssub.s32 1, %s3
  %s6 = scalar_select 0, %s5, %s3
  $region1: #{tpu_custom_call.1} parent=0
    #allocation2 [shape = 'u8[4096]{0}', space=vmem, size = 0x1000, scoped, tag = 'input window, operand 0, single buffered']
    #allocation3 [shape = 's32[1]{0}', space=sflag, size = 0x4, scoped, tag = 'scoped memory for tpu_custom_call.1']
    #allocation4 [shape = 's32[1]{0}', space=sflag, size = 0x4, scoped, tag = 'scoped memory for tpu_custom_call.1']
    #allocation5 [shape = 'u8[32768]{0}', space=vmem, size = 0x8000, scoped, tag = 'input window, operand 1, single buffered']
    #allocation6 [shape = 's32[1]{0}', space=sflag, size = 0x4, scoped, tag = 'scoped memory for tpu_custom_call.1']
    #allocation7 [shape = 'u8[4096]{0}', space=vmem, size = 0x1000, scoped, tag = 'output window, operand 0, single buffered']
    %7 = vsyncpa [#allocation3], 0
    %8 = vsyncpa [#allocation6], 0
    %9 = vsyncpa [#allocation4], 0
    // Predicated region
    $region2: #{tpu_custom_call.1} parent=1 // pred_check
      _
    $region3: #{tpu_custom_call.1} parent=1 // pred_check_branch
      %11 = sbr.rel (0) target = $region5
    $region4: #{tpu_custom_call.1} parent=1 // pred_region
      %s13 = ssub.s32 128, 128
      %14 = vsyncadd [#allocation3], %s13
      %s15 = sshll.u32 [#allocation2], 4
      %s16 = int_to_ptr.vmem [resolvable:$true] %s15
      %21 = dma.hbm_to_vmem [thread:$0]  %s0, 128, %s16, [#allocation3], 64, 64, 4
    $region5: #{tpu_custom_call.1} parent=1 // pred_fallthru
      _
    // Predicated region
    $region6: #{tpu_custom_call.1} parent=1 // pred_check
      _
    $region7: #{tpu_custom_call.1} parent=1 // pred_check_branch
      %23 = sbr.rel (0) target = $region9
    $region8: #{tpu_custom_call.1} parent=1 // pred_region
      %s25 = ssub.s32 1024, 1024
      %26 = vsyncadd [#allocation6], %s25
      %s27 = sshll.u32 [#allocation5], 4
      %s28 = int_to_ptr.vmem [resolvable:$true] %s27
      %33 = dma.hbm_to_vmem [thread:$0]  %s1, 1024, %s28, [#allocation6], 64, 64, 4
    $region9: #{tpu_custom_call.1} parent=1 // pred_fallthru
      _
    // Predicated region
    $region10: #{tpu_custom_call.1} parent=1 // pred_check
      _
    $region11: #{tpu_custom_call.1} parent=1 // pred_check_branch
      %35 = sbr.rel (0) target = $region13
    $region12: #{tpu_custom_call.1} parent=1 // pred_region
      %36 = dma.done [#allocation3], 128
    $region13: #{tpu_custom_call.1} parent=1 // pred_fallthru
      _
    // Predicated region
    $region14: #{tpu_custom_call.1} parent=1 // pred_check
      _
    $region15: #{tpu_custom_call.1} parent=1 // pred_check_branch
      %38 = sbr.rel (0) target = $region17
    $region16: #{tpu_custom_call.1} parent=1 // pred_region
      %39 = dma.done [#allocation6], 1024
    $region17: #{tpu_custom_call.1} parent=1 // pred_fallthru
      _
    %v41 = vld [vmem:[#allocation2] sm:$0xf]
    %v42 = vld [vmem:[#allocation2 + $0x4] sm:$0xf]
    %v43 = vld [vmem:[#allocation5] sm:$0xf]
    %v44 = vld [vmem:[#allocation5 + $0x4] sm:$0xf]
    %v45 = vld [vmem:[#allocation5 + $0x8] sm:$0xf]
    %v46 = vld [vmem:[#allocation5 + $0xc] sm:$0xf]
    %v47 = vld [vmem:[#allocation5 + $0x10] sm:$0xf]
    %v48 = vld [vmem:[#allocation5 + $0x14] sm:$0xf]
    %v49 = vld [vmem:[#allocation5 + $0x18] sm:$0xf]
    %v50 = vld [vmem:[#allocation5 + $0x1c] sm:$0xf]
    %v51 = vld [vmem:[#allocation5 + $0x20] sm:$0xf]
    %v52 = vld [vmem:[#allocation5 + $0x24] sm:$0xf]
    %v53 = vld [vmem:[#allocation5 + $0x28] sm:$0xf]
    %v54 = vld [vmem:[#allocation5 + $0x2c] sm:$0xf]
    %v55 = vld [vmem:[#allocation5 + $0x30] sm:$0xf]
    %v56 = vld [vmem:[#allocation5 + $0x34] sm:$0xf]
    %v57 = vld [vmem:[#allocation5 + $0x38] sm:$0xf]
    %v58 = vld [vmem:[#allocation5 + $0x3c] sm:$0xf]
    %v61 = vunpack.c.l.b16 %v41
    %v62 = vunpack.c.l.b16 %v42
    %v63 = vpack.c.b16 %v62, %v61
    %v81 = vunpack.c.l.b16 %v43
    %v82 = vunpack.c.l.b16 %v44
    %v83 = vunpack.c.l.b16 %v45
    %v84 = vunpack.c.l.b16 %v46
    %v85 = vunpack.c.l.b16 %v47
    %v86 = vunpack.c.l.b16 %v48
    %v87 = vunpack.c.l.b16 %v49
    %v88 = vunpack.c.l.b16 %v50
    %v89 = vunpack.c.l.b16 %v51
    %v90 = vunpack.c.l.b16 %v52
    %v91 = vunpack.c.l.b16 %v53
    %v92 = vunpack.c.l.b16 %v54
    %v93 = vunpack.c.l.b16 %v55
    %v94 = vunpack.c.l.b16 %v56
    %v95 = vunpack.c.l.b16 %v57
    %v96 = vunpack.c.l.b16 %v58
    %v97 = vpack.c.b16 %v82, %v81
    %v98 = vpack.c.b16 %v84, %v83
    %v99 = vpack.c.b16 %v86, %v85
    %v100 = vpack.c.b16 %v88, %v87
    %v101 = vpack.c.b16 %v90, %v89
    %v102 = vpack.c.b16 %v92, %v91
    %v103 = vpack.c.b16 %v94, %v93
    %v104 = vpack.c.b16 %v96, %v95
    %113 = vmatprep.subr.bf16.mxu0 0
    %114 = vmatpush1.bf16.msra.mxu0 %v97
    %115 = vmatprep.subr.bf16.mxu0 0
    %116 = vmatpush1.bf16.msra.mxu0 %v98
    %117 = vmatprep.subr.bf16.mxu0 0
    %118 = vmatpush1.bf16.msra.mxu0 %v99
    %119 = vmatprep.subr.bf16.mxu0 0
    %120 = vmatpush1.bf16.msra.mxu0 %v100
    %121 = vmatprep.subr.bf16.mxu0 0
    %122 = vmatpush1.bf16.msra.mxu0 %v101
    %123 = vmatprep.subr.bf16.mxu0 0
    %124 = vmatpush1.bf16.msra.mxu0 %v102
    %125 = vmatprep.subr.bf16.mxu0 0
    %126 = vmatpush1.bf16.msra.mxu0 %v103
    %127 = vmatprep.subr.bf16.mxu0 0
    %128 = vmatpush1.bf16.msra.mxu0 %v104
    %129 = vmatprep.subr.bf16.mxu0 0
    %130 = vmatpush1.bf16.msra.mxu0 0
    %131 = vmatprep.subr.bf16.mxu0 0
    %132 = vmatpush1.bf16.msra.mxu0 0
    %133 = vmatprep.subr.bf16.mxu0 0
    %134 = vmatpush1.bf16.msra.mxu0 0
    %135 = vmatprep.subr.bf16.mxu0 0
    %136 = vmatpush1.bf16.msra.mxu0 0
    %137 = vmatprep.subr.bf16.mxu0 0
    %138 = vmatpush1.bf16.msra.mxu0 0
    %139 = vmatprep.subr.bf16.mxu0 0
    %140 = vmatpush1.bf16.msra.mxu0 0
    %141 = vmatprep.subr.bf16.mxu0 0
    %142 = vmatpush1.bf16.msra.mxu0 0
    %143 = vmatprep.subr.bf16.mxu0 0
    %144 = vmatpush1.bf16.msra.mxu0 0
    %145 = vmatprep.mubr.bf16.mxu0 0
    %146 = vmatmul.mubr.bf16.gmra.mrb[0].mxu0 %v63
    %v147 = vpop.f32.mrb[0].mxu0
    %v148 = vadd.f32 0.0, %v147
    %v149 = vpop.f32.mrb[0].mxu0
    %v150 = vpop.f32.mrb[0].mxu0
    %v151 = vadd.f32 0.0, %v150
    %v152 = vpop.f32.mrb[0].mxu0
    %153 = vdwg.mxu0
    %v154 = vpack.c.bf16 %v151, %v148
    %v156 = vunpack.c.l.b16 %v154
    %v157 = vunpack.c.h.b16 %v154
    %v158 = vpack.c.b16 %v156, %v156
    %v159 = vpack.c.b16 %v157, %v157
    %162 = vst [vmem:[#allocation7] sm:$0xf] %v158
    %163 = vst [vmem:[#allocation7 + $0x4] sm:$0xf] %v159
    // Predicated region
    $region18: #{tpu_custom_call.1} parent=1 // pred_check
      _
    $region19: #{tpu_custom_call.1} parent=1 // pred_check_branch
      %165 = sbr.rel (0) target = $region21
    $region20: #{tpu_custom_call.1} parent=1 // pred_region
      %s167 = ssub.s32 128, 128
      %168 = vsyncadd [#allocation4], %s167
      %s169 = sshll.u32 [#allocation7], 4
      %s170 = int_to_ptr.vmem [resolvable:$true] %s169
      %175 = dma.vmem_to_hbm [thread:$0]  %s170, 128, %s2, [#allocation4], 64, 64, 4
    $region21: #{tpu_custom_call.1} parent=1 // pred_fallthru
      _
    // Predicated region
    $region22: #{tpu_custom_call.1} parent=1 // pred_check
      _
    $region23: #{tpu_custom_call.1} parent=1 // pred_check_branch
      %177 = sbr.rel (0) target = $region25
    $region24: #{tpu_custom_call.1} parent=1 // pred_region
      %178 = dma.done [#allocation4], 128
    $region25: #{tpu_custom_call.1} parent=1 // pred_fallthru
      _
    %179 = vsyncpa [#allocation3], 1
    %180 = vsyncpa [#allocation6], 1
    %181 = vsyncpa [#allocation4], 1

</llo_original>
